<compile_context>
chip_gen: v6e
topology: v6e:2x2x1
jax: 0.10.0
libtpu: 0.0.40
codegen_flags: <defaults>
</compile_context>

<pallas_src>
import functools

import jax
import jax.numpy as jnp
from jax.experimental import pallas as pl
from jax.experimental.pallas import tpu as pltpu


def _cdiv(a: int, b: int) -> int:
    return -(-a // b)


def _detect_num_tensorcores() -> int:
    """TensorCores per JAX device: 2 on dual-TC chips (v4/v5p/v7x), else 1."""
    try:
        kind = jax.devices()[0].device_kind.lower()
    except Exception:
        return 1
    # Single-TensorCore chips (or per-core devices).
    if ("lite" in kind or "v5e" in kind or "v6e" in kind
            or "v2" in kind or "v3" in kind):
        return 1
    # Dual-TensorCore chips: v4 / v5p megacore, v7x.
    if "7" in kind or "v4" in kind or "v5" in kind:
        return 2
    return 1


def _bce_sum_kernel(x_ref, t_ref, out_ref, *,
                    n_rows: int, tile_n: int, num_cores: int, needs_mask: bool):
    p = pl.program_id(0)   # parallel (per-TensorCore) axis
    i = pl.program_id(1)   # arbitrary (reduction) axis

    @pl.when(i == 0)
    def _init():
        out_ref[...] = jnp.zeros_like(out_ref)

    x = x_ref[...].astype(jnp.float32)
    z = t_ref[...].astype(jnp.float32)

    # Numerically-stable BCE with logits (PyTorch formulation, soft targets OK):
    #   loss = max(x, 0) - x * z + log(1 + exp(-|x|))
    loss = jnp.maximum(x, 0.0) - x * z + jnp.log1p(jnp.exp(-jnp.abs(x)))

    def fold(v):
        # (tile_n, C) -> (1, 1, C): VALU row-group adds + one cheap XLU sublane
        # fold; the single cross-lane reduce is deferred to the wrapper.
        return v.sum(axis=0, keepdims=True)[None]

    if not needs_mask:
        # Hot path (exact geometry): no iota, no compare, no select.
        out_ref[...] += fold(loss)
    else:
        # Rows still valid in this logical block (<= 0 for phantom blocks that
        # were clamped to the last real block by the index_map).
        valid = n_rows - (i * num_cores + p) * tile_n

        @pl.when(valid >= tile_n)            # hot path: full block
        def _full():
            out_ref[...] += fold(loss)

        @pl.when(valid < tile_n)             # cold path: ragged tail / phantom
        def _tail():
            row = jax.lax.broadcasted_iota(jnp.int32, (tile_n, 1), 0)
            out_ref[...] += fold(jnp.where(row < valid, loss, 0.0))


def panns_loss(logits: jax.Array, targets: jax.Array, *,
               target_block_bytes: int = 4 << 20,
               num_cores: int | None = None) -> jax.Array:
    """BCEWithLogitsLoss(logits, targets), mean reduction, computed in Pallas."""
    assert logits.shape == targets.shape, (logits.shape, targets.shape)
    total = int(logits.size)

    # Collapse leading dims (free reshape of a contiguous array): (N, C).
    x2 = logits.reshape(-1, logits.shape[-1])
    t2 = targets.reshape(-1, targets.shape[-1])
    N, C = x2.shape

    isz_x = jnp.dtype(x2.dtype).itemsize
    isz_t = jnp.dtype(t2.dtype).itemsize
    # Sublane packing multiple: 8 for 32-bit, 16 for 16-bit, 32 for 8-bit.
    min_sub = max(8, 32 // min(isz_x, isz_t))

    # Block-row count: ~target_block_bytes per (larger-dtype) input per buffer,
    # capped so the double-buffered footprint (2 inputs x 2 buffers) stays
    # <= ~24 MiB (safe on v7x's 64 MiB VMEM), then clamped to the full N.
    row_bytes = C * max(isz_x, isz_t)
    tile_n = (target_block_bytes // row_bytes) // min_sub * min_sub
    vmem_cap_rows = ((24 << 20) // (2 * C * (isz_x + isz_t))) // min_sub * min_sub
    tile_n = max(min_sub, min(tile_n, vmem_cap_rows))
    if tile_n >= N:
        tile_n = N  # full second-to-last dim is always a legal block size

    num_row_blocks = _cdiv(N, tile_n)
    if num_cores is None:
        num_cores = _detect_num_tensorcores()
    num_cores = max(1, min(num_cores, num_row_blocks))
    steps = _cdiv(num_row_blocks, num_cores)
    grid_blocks = num_cores * steps

    # The mask branch is only emitted when the geometry is actually ragged
    # (partial last block) or when a core has a leftover phantom block.
    needs_mask = (N % tile_n != 0) or (grid_blocks != num_row_blocks)

    # Interleaved (odd/even) block assignment across cores; phantom block
    # indices are clamped to the last real block (their contribution is masked
    # to zero inside the kernel).
    nb = num_row_blocks
    nc = num_cores
    if grid_blocks == nb:
        def in_map(p, i):
            return (i * nc + p, 0)
    else:
        def in_map(p, i):
            return (jnp.minimum(i * nc + p, nb - 1), 0)

    # VMEM budget: 2 pipeline buffers x (both input blocks) + headroom.
    block_bytes_both = tile_n * C * (isz_x + isz_t)
    vmem_limit = int(max(16 << 20, 2 * block_bytes_both + (4 << 20)))

    kernel = functools.partial(
        _bce_sum_kernel, n_rows=N, tile_n=tile_n, num_cores=nc,
        needs_mask=needs_mask)

    partials = pl.pallas_call(
        kernel,
        out_shape=jax.ShapeDtypeStruct((nc, 1, C), jnp.float32),
        grid_spec=pltpu.PrefetchScalarGridSpec(
            num_scalar_prefetch=0,
            grid=(nc, steps),
            in_specs=[
                pl.BlockSpec((tile_n, C), in_map),
                pl.BlockSpec((tile_n, C), in_map),
            ],
            out_specs=pl.BlockSpec((1, 1, C), lambda p, i: (p, 0, 0)),
        ),
        compiler_params=pltpu.CompilerParams(
            dimension_semantics=("parallel", "arbitrary"),
            vmem_limit_bytes=vmem_limit,
        ),
    )(x2, t2)

    # Single cross-lane/cross-core reduce + mean, done once in the wrapper.
    return jnp.sum(partials) * jnp.float32(1.0 / total)


def _reference_loss(logits, targets):
    x = logits.astype(jnp.float32)
    z = targets.astype(jnp.float32)
    loss = jnp.maximum(x, 0.0) - x * z + jnp.log1p(jnp.exp(-jnp.abs(x)))
    return jnp.mean(loss)


if __name__ == "__main__":
    key = jax.random.PRNGKey(0)
    k1, k2, k3, k4 = jax.random.split(key, 4)

    # PANNs/AudioSet-style shapes: batch x 527 classes.  C=527 exercises the
    # non-128-aligned lane tail (handled by the compiler's lane masking).
    N, C = 6, 527
    logits = jax.random.normal(k1, (N, C), dtype=jnp.float32)
    targets = jax.random.uniform(k2, (N, C), dtype=jnp.float32)  # soft labels

    loss = jax.block_until_ready(panns_loss(logits, targets))
    ref = _reference_loss(logits, targets)
    assert jnp.allclose(loss, ref, rtol=1e-5, atol=1e-6), (loss, ref)

    # Exercise the multi-block / ragged-row-tail / phantom-block code paths by
    # forcing a tiny block size and a 2-wide parallel axis (safe on 1-TC chips).
    N2, C2 = 68, 527
    logits2 = jax.random.normal(k3, (N2, C2), dtype=jnp.float32)
    targets2 = jax.random.uniform(k4, (N2, C2), dtype=jnp.float32)
    loss2 = jax.block_until_ready(
        panns_loss(logits2, targets2, target_block_bytes=16 << 10, num_cores=2))
    ref2 = _reference_loss(logits2, targets2)
    assert jnp.allclose(loss2, ref2, rtol=1e-5, atol=1e-6), (loss2, ref2)

    print("KERNEL_OK")
</pallas_src>

<mosaic_0001>
module attributes {stable_mosaic.version = 11 : i64} {
  func.func @_bce_sum_kernel(%arg0: i32, %arg1: i32, %arg2: memref<6x527xf32, #tpu.memory_space<vmem>>, %arg3: memref<6x527xf32, #tpu.memory_space<vmem>>, %arg4: memref<1x1x527xf32, #tpu.memory_space<vmem>>) attributes {dimension_semantics = [#tpu.dimension_semantics<parallel>, #tpu.dimension_semantics<arbitrary>], iteration_bounds = array<i64: 1, 1>, scalar_prefetch = 0 : i64, scratch_operands = 0 : i64, tpu.core_type = #tpu.core_type<tc>, window_params = [{transform_indices = @transform_0, window_bounds = array<i64: 6, 527>}, {transform_indices = @transform_1, window_bounds = array<i64: 6, 527>}, {transform_indices = @transform_2, window_bounds = array<i64: 1, 1, 527>}]} {
    %c0_i32 = arith.constant 0 : i32
    %0 = arith.cmpi eq, %arg1, %c0_i32 : i32
    %1 = arith.extui %0 : i1 to i32
    %c0_i32_0 = arith.constant 0 : i32
    %2 = arith.cmpi ne, %1, %c0_i32_0 : i32
    scf.if %2 {
      %cst_12 = arith.constant 0.000000e+00 : f32
      %21 = vector.broadcast %cst_12 : f32 to vector<1x1x527xf32>
      %c0_13 = arith.constant 0 : index
      %c0_14 = arith.constant 0 : index
      %c0_15 = arith.constant 0 : index
      %22 = vector.load %arg4[%c0_13, %c0_14, %c0_15] : memref<1x1x527xf32, #tpu.memory_space<vmem>>, vector<1x1x527xf32>
      tpu.vector_store %arg4[%c0_13, %c0_14, %c0_15], %21 {strides = array<i32>} : memref<1x1x527xf32, #tpu.memory_space<vmem>>, vector<1x1x527xf32>,
    } else {
    }
    %c0 = arith.constant 0 : index
    %c0_1 = arith.constant 0 : index
    %3 = vector.load %arg2[%c0, %c0_1] : memref<6x527xf32, #tpu.memory_space<vmem>>, vector<6x527xf32>
    %c0_2 = arith.constant 0 : index
    %c0_3 = arith.constant 0 : index
    %4 = vector.load %arg3[%c0_2, %c0_3] : memref<6x527xf32, #tpu.memory_space<vmem>>, vector<6x527xf32>
    %cst = arith.constant 0.000000e+00 : f32
    %5 = vector.broadcast %cst : f32 to vector<6x527xf32>
    %6 = arith.maximumf %3, %5 : vector<6x527xf32>
    %7 = arith.mulf %3, %4 : vector<6x527xf32>
    %8 = arith.subf %6, %7 : vector<6x527xf32>
    %9 = math.absf %3 : vector<6x527xf32>
    %cst_4 = arith.constant 0.000000e+00 : f32
    %10 = vector.broadcast %cst_4 : f32 to vector<6x527xf32>
    %11 = arith.subf %10, %9 : vector<6x527xf32>
    %12 = math.exp %11 : vector<6x527xf32>
    %13 = math.log1p %12 : vector<6x527xf32>
    %14 = arith.addf %8, %13 : vector<6x527xf32>
    %c0_5 = arith.constant 0 : index
    %c0_6 = arith.constant 0 : index
    %c0_7 = arith.constant 0 : index
    %15 = vector.load %arg4[%c0_5, %c0_6, %c0_7] : memref<1x1x527xf32, #tpu.memory_space<vmem>>, vector<1x1x527xf32>
    %cst_8 = arith.constant dense<0.000000e+00> : vector<527xf32>
    %16 = vector.multi_reduction <add>, %14, %cst_8 [0] : vector<6x527xf32> to vector<527xf32>
    %17 = vector.shape_cast %16 : vector<527xf32> to vector<1x527xf32>
    %18 = vector.shape_cast %17 : vector<1x527xf32> to vector<1x1x527xf32>
    %19 = arith.addf %15, %18 : vector<1x1x527xf32>
    %c0_9 = arith.constant 0 : index
    %c0_10 = arith.constant 0 : index
    %c0_11 = arith.constant 0 : index
    %20 = vector.load %arg4[%c0_9, %c0_10, %c0_11] : memref<1x1x527xf32, #tpu.memory_space<vmem>>, vector<1x1x527xf32>
    tpu.vector_store %arg4[%c0_9, %c0_10, %c0_11], %19 {strides = array<i32>} : memref<1x1x527xf32, #tpu.memory_space<vmem>>, vector<1x1x527xf32>,
    return
  }
  func.func @transform_0(%arg0: i32, %arg1: i32) -> (i32, i32) {
    %c1_i32 = arith.constant 1 : i32
    %0 = arith.muli %arg1, %c1_i32 : i32
    %1 = arith.addi %0, %arg0 : i32
    %c0_i32 = arith.constant 0 : i32
    %c0_i32_0 = arith.constant 0 : i32
    return %1, %c0_i32 : i32, i32
  }
  func.func @transform_1(%arg0: i32, %arg1: i32) -> (i32, i32) {
    %c1_i32 = arith.constant 1 : i32
    %0 = arith.muli %arg1, %c1_i32 : i32
    %1 = arith.addi %0, %arg0 : i32
    %c0_i32 = arith.constant 0 : i32
    %c0_i32_0 = arith.constant 0 : i32
    return %1, %c0_i32 : i32, i32
  }
  func.func @transform_2(%arg0: i32, %arg1: i32) -> (i32, i32, i32) {
    %c0_i32 = arith.constant 0 : i32
    %c0_i32_0 = arith.constant 0 : i32
    %c0_i32_1 = arith.constant 0 : i32
    return %arg0, %c0_i32, %c0_i32_0 : i32, i32, i32
  }
}

</mosaic_0001>

<llo_original>
// kernel: tpu_custom_call.1
$region0: #{tpu_custom_call.1}
  #allocation0 [shape = 'u32[]', space=smem, size = 0x4, offset = 0x4, fixed_abs, tag = 'smem constant byte address 0x4 - core index']
  #allocation1 [shape = 'u32[144,128]{1,0:T(1,128)}', space=vmem, size = 0x12000, scoped, tag = 'internal scratch']
  %s0 = inlined_call_operand.hbm [shape: f32[6,527], index: 0, kind: input, shape index: {}]
  %s1 = inlined_call_operand.hbm [shape: f32[6,527], index: 1, kind: input, shape index: {}]
  %s2 = inlined_call_operand.hbm [shape: f32[1,1,527], index: 2, kind: output, shape index: {}]
  %s3 = sld [smem:[#allocation0]]
  $region30: #{tpu_custom_call.1} parent=0
    _
  %s5 = ssub.s32 1, %s3
  %s6 = scalar_select 0, %s5, %s3
  $region1: #{tpu_custom_call.1} parent=0
    #allocation2 [shape = 'u8[20480]{0}', space=vmem, size = 0x5000, scoped, tag = 'input window, operand 0, single buffered']
    #allocation3 [shape = 's32[1]{0}', space=sflag, size = 0x4, scoped, tag = 'scoped memory for tpu_custom_call.1']
    #allocation4 [shape = 's32[1]{0}', space=sflag, size = 0x4, scoped, tag = 'scoped memory for tpu_custom_call.1']
    #allocation5 [shape = 'u8[20480]{0}', space=vmem, size = 0x5000, scoped, tag = 'input window, operand 1, single buffered']
    #allocation6 [shape = 's32[1]{0}', space=sflag, size = 0x4, scoped, tag = 'scoped memory for tpu_custom_call.1']
    #allocation7 [shape = 'u8[2560]{0}', space=vmem, size = 0xc00, scoped, tag = 'output window, operand 0, single buffered']
    %7 = vsyncpa [#allocation3], 0
    %8 = vsyncpa [#allocation6], 0
    %9 = vsyncpa [#allocation4], 0
    // Predicated region
    $region2: #{tpu_custom_call.1} parent=1 // pred_check
      _
    $region3: #{tpu_custom_call.1} parent=1 // pred_check_branch
      %11 = sbr.rel (0) target = $region5
    $region4: #{tpu_custom_call.1} parent=1 // pred_region
      %s12 = sadd.s32 0, 0
      %s14 = ssub.s32 640, 640
      %15 = vsyncadd [#allocation3], %s14
      %s16 = smul.addr %s12, 5
      %s17 = smul.addr %s16, 128
      %s18 = scalar_lea.hbm %s0, %s17
      %s20 = sshll.u32 [#allocation2], 4
      %s21 = int_to_ptr.vmem [resolvable:$true] %s20
      %23 = dma.hbm_to_vmem [thread:$0]  %s18, 640, %s21, [#allocation3]
    $region5: #{tpu_custom_call.1} parent=1 // pred_fallthru
      _
    // Predicated region
    $region6: #{tpu_custom_call.1} parent=1 // pred_check
      _
    $region7: #{tpu_custom_call.1} parent=1 // pred_check_branch
      %25 = sbr.rel (0) target = $region9
    $region8: #{tpu_custom_call.1} parent=1 // pred_region
      %s26 = sadd.s32 0, 0
      %s28 = ssub.s32 640, 640
      %29 = vsyncadd [#allocation6], %s28
      %s30 = smul.addr %s26, 5
      %s31 = smul.addr %s30, 128
      %s32 = scalar_lea.hbm %s1, %s31
      %s34 = sshll.u32 [#allocation5], 4
      %s35 = int_to_ptr.vmem [resolvable:$true] %s34
      %37 = dma.hbm_to_vmem [thread:$0]  %s32, 640, %s35, [#allocation6]
    $region9: #{tpu_custom_call.1} parent=1 // pred_fallthru
      _
    // Predicated region
    $region10: #{tpu_custom_call.1} parent=1 // pred_check
      _
    $region11: #{tpu_custom_call.1} parent=1 // pred_check_branch
      %39 = sbr.rel (0) target = $region13
    $region12: #{tpu_custom_call.1} parent=1 // pred_region
      %40 = dma.done [#allocation3], 640
    $region13: #{tpu_custom_call.1} parent=1 // pred_fallthru
      _
    // Predicated region
    $region14: #{tpu_custom_call.1} parent=1 // pred_check
      _
    $region15: #{tpu_custom_call.1} parent=1 // pred_check_branch
      %42 = sbr.rel (0) target = $region17
    $region16: #{tpu_custom_call.1} parent=1 // pred_region
      %43 = dma.done [#allocation6], 640
    $region17: #{tpu_custom_call.1} parent=1 // pred_fallthru
      _
    %s44 = sadd.s32 0, 0
    %s45 = sadd.s32 0, 0
    %p46 = scmp.eq.s32.totalorder 0, 0
    // Predicated region
    $region18: #{tpu_custom_call.1} parent=1 // pred_check
      %p47 = pneg %p46
    $region19: #{tpu_custom_call.1} parent=1 // pred_check_branch
      %49 = sbr.rel (%p47) target = $region21
    $region20: #{tpu_custom_call.1} parent=1 // pred_region
      %v50 = vlaneseq
      %vm51 = vcmp.ge.s32.totalorder %v50, 0
      %vm52 = vcmp.lt.s32.totalorder %v50, 527
      %vm53 = vmand %vm51, %vm52
      %54 = vst.msk [vmem:[#allocation7] sm:$0x1f] %vm53, 0.0
    $region21: #{tpu_custom_call.1} parent=1 // pred_fallthru
      _
    %v55 = vld [vmem:[#allocation2] sm:$0x3f]
    %v56 = vld [vmem:[#allocation2 + $0x8] sm:$0x3f]
    %v57 = vld [vmem:[#allocation2 + $0x10] sm:$0x3f]
    %v58 = vld [vmem:[#allocation2 + $0x18] sm:$0x3f]
    %v59 = vld [vmem:[#allocation2 + $0x20] sm:$0x3f]
    %v60 = vld [vmem:[#allocation5] sm:$0x3f]
    %v61 = vld [vmem:[#allocation5 + $0x8] sm:$0x3f]
    %v62 = vld [vmem:[#allocation5 + $0x10] sm:$0x3f]
    %v63 = vld [vmem:[#allocation5 + $0x18] sm:$0x3f]
    %v64 = vld [vmem:[#allocation5 + $0x20] sm:$0x3f]
    %v65 = vmax.f32 %v55, 0.0
    %v66 = vmax.f32 %v56, 0.0
    %v67 = vmax.f32 %v57, 0.0
    %v68 = vmax.f32 %v58, 0.0
    %v69 = vmax.f32 %v59, 0.0
    %v70 = vmul.f32 %v55, %v60
    %v71 = vmul.f32 %v56, %v61
    %v72 = vmul.f32 %v57, %v62
    %v73 = vmul.f32 %v58, %v63
    %v74 = vmul.f32 %v59, %v64
    %v75 = vsub.f32 %v65, %v70
    %v76 = vsub.f32 %v66, %v71
    %v77 = vsub.f32 %v67, %v72
    %v78 = vsub.f32 %v68, %v73
    %v79 = vsub.f32 %v69, %v74
    %v80 = vand.u32 2147483647, %v55
    %v81 = vand.u32 2147483647, %v56
    %v82 = vand.u32 2147483647, %v57
    %v83 = vand.u32 2147483647, %v58
    %v84 = vand.u32 2147483647, %v59
    %v85 = vsub.f32 0.0, %v80
    %v86 = vsub.f32 0.0, %v81
    %v87 = vsub.f32 0.0, %v82
    %v88 = vsub.f32 0.0, %v83
    %v89 = vsub.f32 0.0, %v84
    %v90 = vmul.f32 %v85, 1.442695
    %v91 = vpow.pop %v90
    %v92 = vmul.f32 %v86, 1.442695
    %v93 = vpow.pop %v92
    %v94 = vmul.f32 %v87, 1.442695
    %v95 = vpow.pop %v94
    %v96 = vmul.f32 %v88, 1.442695
    %v97 = vpow.pop %v96
    %v98 = vmul.f32 %v89, 1.442695
    %v99 = vpow.pop %v98
    %v100 = vadd.f32 %v91, 1.0
    %v101 = vlog2.pop %v100
    %v102 = vmul.f32 %v101, 0.6931472
    %v103 = vmul.f32 -0.5, %v91
    %v104 = vadd.f32 %v103, 1.0
    %v105 = vmul.f32 %v104, %v91
    %v106 = vand.u32 2147483647, %v91
    %vm107 = vcmp.lt.f32.partialorder %v106, 0.0004427343
    %v108 = vsel %vm107, %v105, %v102
    %v109 = vadd.f32 %v93, 1.0
    %v110 = vlog2.pop %v109
    %v111 = vmul.f32 %v110, 0.6931472
    %v112 = vmul.f32 -0.5, %v93
    %v113 = vadd.f32 %v112, 1.0
    %v114 = vmul.f32 %v113, %v93
    %v115 = vand.u32 2147483647, %v93
    %vm116 = vcmp.lt.f32.partialorder %v115, 0.0004427343
    %v117 = vsel %vm116, %v114, %v111
    %v118 = vadd.f32 %v95, 1.0
    %v119 = vlog2.pop %v118
    %v120 = vmul.f32 %v119, 0.6931472
    %v121 = vmul.f32 -0.5, %v95
    %v122 = vadd.f32 %v121, 1.0
    %v123 = vmul.f32 %v122, %v95
    %v124 = vand.u32 2147483647, %v95
    %vm125 = vcmp.lt.f32.partialorder %v124, 0.0004427343
    %v126 = vsel %vm125, %v123, %v120
    %v127 = vadd.f32 %v97, 1.0
    %v128 = vlog2.pop %v127
    %v129 = vmul.f32 %v128, 0.6931472
    %v130 = vmul.f32 -0.5, %v97
    %v131 = vadd.f32 %v130, 1.0
    %v132 = vmul.f32 %v131, %v97
    %v133 = vand.u32 2147483647, %v97
    %vm134 = vcmp.lt.f32.partialorder %v133, 0.0004427343
    %v135 = vsel %vm134, %v132, %v129
    %v136 = vadd.f32 %v99, 1.0
    %v137 = vlog2.pop %v136
    %v138 = vmul.f32 %v137, 0.6931472
    %v139 = vmul.f32 -0.5, %v99
    %v140 = vadd.f32 %v139, 1.0
    %v141 = vmul.f32 %v140, %v99
    %v142 = vand.u32 2147483647, %v99
    %vm143 = vcmp.lt.f32.partialorder %v142, 0.0004427343
    %v144 = vsel %vm143, %v141, %v138
    %v145 = vadd.f32 %v75, %v108
    %v146 = vadd.f32 %v76, %v117
    %v147 = vadd.f32 %v77, %v126
    %v148 = vadd.f32 %v78, %v135
    %v149 = vadd.f32 %v79, %v144
    %v150 = vld [vmem:[#allocation7] sm:$0x1f]
    %vm151 = vcmask 1045504
    %v152 = vsel %vm151, %v145, 0.0
    %v153 = vrot.slane %v152, 4
    %v154 = vadd.f32 %v152, %v153
    %v155 = vrot.slane %v154, 2
    %v156 = vadd.f32 %v154, %v155
    %v157 = vrot.slane %v156, 1
    %v158 = vadd.f32 %v156, %v157
    %v159 = vsel %vm151, %v146, 0.0
    %v160 = vrot.slane %v159, 4
    %v161 = vadd.f32 %v159, %v160
    %v162 = vrot.slane %v161, 2
    %v163 = vadd.f32 %v161, %v162
    %v164 = vrot.slane %v163, 1
    %v165 = vadd.f32 %v163, %v164
    %v166 = vsel %vm151, %v147, 0.0
    %v167 = vrot.slane %v166, 4
    %v168 = vadd.f32 %v166, %v167
    %v169 = vrot.slane %v168, 2
    %v170 = vadd.f32 %v168, %v169
    %v171 = vrot.slane %v170, 1
    %v172 = vadd.f32 %v170, %v171
    %v173 = vsel %vm151, %v148, 0.0
    %v174 = vrot.slane %v173, 4
    %v175 = vadd.f32 %v173, %v174
    %v176 = vrot.slane %v175, 2
    %v177 = vadd.f32 %v175, %v176
    %v178 = vrot.slane %v177, 1
    %v179 = vadd.f32 %v177, %v178
    %vm180 = vcmask 119808
    %v181 = vsel %vm180, %v149, 0.0
    %v182 = vrot.slane %v181, 4
    %v183 = vadd.f32 %v181, %v182
    %v184 = vrot.slane %v183, 2
    %v185 = vadd.f32 %v183, %v184
    %v186 = vrot.slane %v185, 1
    %v187 = vadd.f32 %v185, %v186
    %v193 = vcombine.low %v158, %v165
    %v194 = vcombine.low %v172, %v179
    %v196 = vunpack.c.l.s4 1966171168
    %v197 = vunpack.c.0.s8 %v196
    %v198 = vlaneseq
    %v199 = vshrl.u32 %v198, 7
    %v200 = vsub.s32 %v197, %v199
    %v201 = vrot.slane %v193, %v200
    %v203 = vunpack.c.l.s4 1966171168
    %v204 = vunpack.c.0.s8 %v203
    %v205 = vlaneseq
    %v206 = vshrl.u32 %v205, 7
    %v207 = vsub.s32 %v204, %v206
    %v208 = vrot.slane %v194, %v207
    %v210 = vunpack.c.l.s4 1966171168
    %v211 = vunpack.c.0.s8 %v210
    %v212 = vlaneseq
    %v213 = vshrl.u32 %v212, 7
    %v214 = vsub.s32 %v211, %v213
    %v215 = vrot.slane %v187, %v214
    %v216 = vcombine.low %v201, %v208
    %v218 = vunpack.c.l.s4 1966171168
    %v219 = vunpack.c.0.s8 %v218
    %v220 = vlaneseq
    %v221 = vshrl.u32 %v220, 7
    %v222 = vsub.s32 %v219, %v221
    %v223 = vrot.slane %v216, %v222
    %v225 = vunpack.c.l.s4 1966171168
    %v226 = vunpack.c.0.s8 %v225
    %v227 = vlaneseq
    %v228 = vshrl.u32 %v227, 7
    %v229 = vsub.s32 %v226, %v228
    %v230 = vrot.slane %v215, %v229
    %v231 = vcombine.low %v223, %v230
    %v233 = vadd.f32 %v150, %v231
    %v234 = vlaneseq
    %vm235 = vcmp.ge.s32.totalorder %v234, 0
    %vm236 = vcmp.lt.s32.totalorder %v234, 527
    %vm237 = vmand %vm235, %vm236
    %238 = vst.msk [vmem:[#allocation7] sm:$0x1f] %vm237, %v233
    // Predicated region
    $region22: #{tpu_custom_call.1} parent=1 // pred_check
      _
    $region23: #{tpu_custom_call.1} parent=1 // pred_check_branch
      %240 = sbr.rel (0) target = $region25
    $region24: #{tpu_custom_call.1} parent=1 // pred_region
      %s242 = ssub.s32 80, 80
      %243 = vsyncadd [#allocation4], %s242
      %s245 = sshll.u32 [#allocation7], 4
      %s246 = int_to_ptr.vmem [resolvable:$true] %s245
      %248 = dma.vmem_to_hbm [thread:$0]  %s246, 80, %s2, [#allocation4]
    $region25: #{tpu_custom_call.1} parent=1 // pred_fallthru
      _
    // Predicated region
    $region26: #{tpu_custom_call.1} parent=1 // pred_check
      _
    $region27: #{tpu_custom_call.1} parent=1 // pred_check_branch
      %250 = sbr.rel (0) target = $region29
    $region28: #{tpu_custom_call.1} parent=1 // pred_region
      %251 = dma.done [#allocation4], 80
    $region29: #{tpu_custom_call.1} parent=1 // pred_fallthru
      _
    %252 = vsyncpa [#allocation3], 1
    %253 = vsyncpa [#allocation6], 1
    %254 = vsyncpa [#allocation4], 1

</llo_original>
